<compile_context>
chip_gen: v6e
topology: v6e:2x2x1
jax: 0.10.0
libtpu: 0.0.40
codegen_flags: <defaults>
</compile_context>

<pallas_src>
import functools

import jax
import jax.numpy as jnp
from jax.experimental import pallas as pl
from jax.experimental.pallas import tpu as pltpu

_LANE = 128


def _sublane(dtype):
    return {4: 8, 2: 16, 1: 32}.get(jnp.dtype(dtype).itemsize, 8)


def _conditioning_kernel(lc_ref, gc_ref, out_ref, *, split_store):
    # lc_ref  : (Bt, I, TT)     local-conditioning tile
    # gc_ref  : (Bt, G, 1)      per-batch global conditioning (resident over t)
    # out_ref : (Bt, I + G, TT) output tile
    Bt, I, TT = lc_ref.shape
    G = gc_ref.shape[1]
    if split_store:
        # I is sublane-aligned: both writes are unmasked full-vreg stores.
        out_ref[:, :I, :] = lc_ref[...].astype(out_ref.dtype)
        out_ref[:, I:, :] = jnp.broadcast_to(
            gc_ref[...], (Bt, G, TT)).astype(out_ref.dtype)
    else:
        # Unaligned I: assemble one value and do a single full-tile store.
        gc_rep = jnp.broadcast_to(gc_ref[...], (Bt, G, TT))
        out_ref[...] = jnp.concatenate(
            [lc_ref[...], gc_rep], axis=1).astype(out_ref.dtype)


def _choose_tiles(B, I, G, T, dtype_bytes,
                  vmem_budget=24 * 1024 * 1024,
                  target_step_bytes=1 << 20):
    """Pick (batch tile Bt, time tile tt) that is lane-dense and VMEM-aware."""

    def step_bytes(bt, tt):
        # One copy of the per-step working set (lc tile + gc tile + out tile).
        return bt * ((I + (I + G)) * tt + G) * dtype_bytes

    if T < _LANE:
        tt = T  # full-dim block (lane-density impossible; allowed by Pallas)
    else:
        lane_t = pl.cdiv(T, _LANE) * _LANE
        # Largest multiple of 128 whose double-buffered footprint (Bt=1) fits.
        max_tt = (vmem_budget // (2 * (2 * I + G) * dtype_bytes))
        max_tt = (max_tt // _LANE) * _LANE
        tt = max(_LANE, min(lane_t, max_tt))

    # Fold batch elements to amortize the ~0.35 us per-grid-step overhead.
    bt = 1
    for cand in range(1, B + 1):
        if B % cand:
            continue
        if 2 * step_bytes(cand, tt) > vmem_budget:
            break
        bt = cand
        if step_bytes(cand, tt) >= target_step_bytes:
            break

    # v7x has 2 TensorCores: if everything collapsed to a single grid step,
    # split the time axis so a "parallel" axis has >= 2 steps.
    grid_t = pl.cdiv(T, tt)
    if bt == B and grid_t == 1 and tt >= 2 * _LANE:
        tt = pl.cdiv(tt // 2, _LANE) * _LANE
    return bt, tt


def conditioning_forward(lc, speaker_inds, weight, bias):
    """lc: (B, I, T), speaker_inds: (B,) int, weight: (G, S), bias: (G,)
    ->  (B, I+G, T)."""
    B, I, T = lc.shape
    G, _S = weight.shape
    dtype = lc.dtype
    itemsize = jnp.dtype(dtype).itemsize

    # Hoisted speaker embedding (one_hot @ W.T + bias == gather of W columns).
    gc = jnp.take(weight, speaker_inds, axis=1).T + bias          # (B, G)
    gc = gc.astype(dtype).reshape(B, G, 1)

    bt, tt = _choose_tiles(B, I, G, T, itemsize)
    grid = (B // bt, pl.cdiv(T, tt))

    kernel = functools.partial(
        _conditioning_kernel, split_store=(I % _sublane(dtype) == 0))

    # Explicit scoped-VMEM budget: double-buffered working set + headroom,
    # at least 32 MiB (fixes v5e's 16 MiB default), capped at 48 MiB (v7x-safe).
    step = bt * ((2 * I + G) * tt + G) * itemsize
    vmem_limit = int(min(48 << 20, max(32 << 20, 2 * step + (4 << 20))))

    # Pure data movement: read lc + gc, write out.
    bytes_accessed = (B * I * T + B * (I + G) * T + B * G) * itemsize
    cost = pl.CostEstimate(
        flops=0, transcendentals=0, bytes_accessed=bytes_accessed)

    grid_spec = pltpu.PrefetchScalarGridSpec(
        num_scalar_prefetch=0,
        grid=grid,
        in_specs=[
            pl.BlockSpec((bt, I, tt), lambda b, t: (b, 0, t)),    # lc tile
            pl.BlockSpec((bt, G, 1), lambda b, t: (b, 0, 0)),     # gc (resident in t)
        ],
        out_specs=pl.BlockSpec((bt, I + G, tt), lambda b, t: (b, 0, t)),
    )

    return pl.pallas_call(
        kernel,
        out_shape=jax.ShapeDtypeStruct((B, I + G, T), dtype),
        grid_spec=grid_spec,
        compiler_params=pltpu.CompilerParams(
            dimension_semantics=("parallel", "parallel"),
            vmem_limit_bytes=vmem_limit),
        cost_estimate=cost,
    )(lc, gc)


def conditioning_ref(lc, speaker_inds, weight, bias):
    """Plain-JAX reference of the PyTorch forward."""
    S = weight.shape[1]
    one_hot = jax.nn.one_hot(speaker_inds, S, dtype=lc.dtype)      # (B, S)
    gc = one_hot @ weight.T + bias                                 # (B, G)
    gc_rep = jnp.broadcast_to(gc[:, :, None],
                              (lc.shape[0], gc.shape[1], lc.shape[2]))
    return jnp.concatenate([lc, gc_rep], axis=1)


if __name__ == "__main__":
    key = jax.random.PRNGKey(0)
    k_lc, k_w, k_b, k_ind, k_lc2 = jax.random.split(key, 5)

    # Case 1: sublane-aligned I, T a multiple of 128 (clean tiles).
    B, S, G, I, T = 2, 4, 8, 8, 1024
    lc = jax.random.normal(k_lc, (B, I, T), dtype=jnp.float32)
    weight = jax.random.normal(k_w, (G, S), dtype=jnp.float32) * 0.1
    bias = jax.random.normal(k_b, (G,), dtype=jnp.float32) * 0.1
    speaker_inds = jax.random.randint(k_ind, (B,), 0, S, dtype=jnp.int32)

    out = jax.block_until_ready(
        conditioning_forward(lc, speaker_inds, weight, bias))
    ref = conditioning_ref(lc, speaker_inds, weight, bias)
    assert out.shape == (B, I + G, T)
    assert jnp.allclose(out, ref, atol=1e-5, rtol=1e-5)

    # Case 2: unaligned I (12) and ragged T (1000) -> single-store path +
    # masked last time tile.
    I2, T2 = 12, 1000
    lc2 = jax.random.normal(k_lc2, (B, I2, T2), dtype=jnp.float32)
    out2 = jax.block_until_ready(
        conditioning_forward(lc2, speaker_inds, weight, bias))
    ref2 = conditioning_ref(lc2, speaker_inds, weight, bias)
    assert out2.shape == (B, I2 + G, T2)
    assert jnp.allclose(out2, ref2, atol=1e-5, rtol=1e-5)

    print("KERNEL_OK")
</pallas_src>

<mosaic_0001>
module attributes {stable_mosaic.version = 11 : i64} {
  func.func @_conditioning_kernel(%arg0: i32, %arg1: i32, %arg2: memref<2x8x512xf32, #tpu.memory_space<vmem>>, %arg3: memref<2x8x1xf32, #tpu.memory_space<vmem>>, %arg4: memref<2x16x512xf32, #tpu.memory_space<vmem>>) attributes {dimension_semantics = [#tpu.dimension_semantics<parallel>, #tpu.dimension_semantics<parallel>], iteration_bounds = array<i64: 1, 2>, scalar_prefetch = 0 : i64, scratch_operands = 0 : i64, tpu.core_type = #tpu.core_type<tc>, window_params = [{transform_indices = @transform_0, window_bounds = array<i64: 2, 8, 512>}, {transform_indices = @transform_1, window_bounds = array<i64: 2, 8, 1>}, {transform_indices = @transform_2, window_bounds = array<i64: 2, 16, 512>}]} {
    %c0 = arith.constant 0 : index
    %c0_0 = arith.constant 0 : index
    %c0_1 = arith.constant 0 : index
    %0 = vector.load %arg2[%c0, %c0_0, %c0_1] : memref<2x8x512xf32, #tpu.memory_space<vmem>>, vector<2x8x512xf32>
    %c0_2 = arith.constant 0 : index
    %c0_3 = arith.constant 0 : index
    %c0_4 = arith.constant 0 : index
    %1 = vector.load %arg4[%c0_2, %c0_3, %c0_4] : memref<2x16x512xf32, #tpu.memory_space<vmem>>, vector<2x8x512xf32>
    tpu.vector_store %arg4[%c0_2, %c0_3, %c0_4], %0 {strides = array<i32>} : memref<2x16x512xf32, #tpu.memory_space<vmem>>, vector<2x8x512xf32>,
    %c0_5 = arith.constant 0 : index
    %c0_6 = arith.constant 0 : index
    %c0_7 = arith.constant 0 : index
    %2 = vector.load %arg3[%c0_5, %c0_6, %c0_7] : memref<2x8x1xf32, #tpu.memory_space<vmem>>, vector<2x8x1xf32>
    %3 = vector.shape_cast %2 : vector<2x8x1xf32> to vector<2x8x1xf32>
    %4 = vector.broadcast %3 : vector<2x8x1xf32> to vector<2x8x512xf32>
    %c0_8 = arith.constant 0 : index
    %c8 = arith.constant 8 : index
    %c0_9 = arith.constant 0 : index
    %5 = vector.load %arg4[%c0_8, %c8, %c0_9] : memref<2x16x512xf32, #tpu.memory_space<vmem>>, vector<2x8x512xf32>
    tpu.vector_store %arg4[%c0_8, %c8, %c0_9], %4 {strides = array<i32>} : memref<2x16x512xf32, #tpu.memory_space<vmem>>, vector<2x8x512xf32>,
    return
  }
  func.func @transform_0(%arg0: i32, %arg1: i32) -> (i32, i32, i32) {
    %c0_i32 = arith.constant 0 : i32
    %c0_i32_0 = arith.constant 0 : i32
    return %arg0, %c0_i32, %arg1 : i32, i32, i32
  }
  func.func @transform_1(%arg0: i32, %arg1: i32) -> (i32, i32, i32) {
    %c0_i32 = arith.constant 0 : i32
    %c0_i32_0 = arith.constant 0 : i32
    %c0_i32_1 = arith.constant 0 : i32
    return %arg0, %c0_i32, %c0_i32_0 : i32, i32, i32
  }
  func.func @transform_2(%arg0: i32, %arg1: i32) -> (i32, i32, i32) {
    %c0_i32 = arith.constant 0 : i32
    %c0_i32_0 = arith.constant 0 : i32
    return %arg0, %c0_i32, %arg1 : i32, i32, i32
  }
}

</mosaic_0001>

<llo_original>
// kernel: tpu_custom_call.1
$region0: #{tpu_custom_call.1}
  #allocation0 [shape = 'u32[]', space=smem, size = 0x4, offset = 0x4, fixed_abs, tag = 'smem constant byte address 0x4 - core index']
  #allocation1 [shape = 'u32[144,128]{1,0:T(1,128)}', space=vmem, size = 0x12000, scoped, tag = 'internal scratch']
  %s0 = inlined_call_operand.hbm [shape: f32[2,8,1024], index: 0, kind: input, shape index: {}]
  %s1 = inlined_call_operand.vmem [shape: f32[2,8,1], index: 1, kind: input, shape index: {}]
  %s2 = inlined_call_operand.hbm [shape: f32[2,16,1024], index: 2, kind: output, shape index: {}]
  %s3 = sld [smem:[#allocation0]]
  $region45: #{tpu_custom_call.1} parent=0
    _
  %s5 = ssub.s32 1, %s3
  %s6 = scalar_select 0, %s5, %s3
  $region1: #{tpu_custom_call.1} parent=0
    #allocation2 [shape = 'u8[65536]{0}', space=vmem, size = 0x10000, scoped, tag = 'input window, operand 0']
    #allocation3 [shape = 's32[2]{0}', space=sflag, size = 0x8, scoped, tag = 'scoped memory for tpu_custom_call.1']
    #allocation4 [shape = 's32[2]{0}', space=sflag, size = 0x8, scoped, tag = 'scoped memory for tpu_custom_call.1']
    #allocation5 [shape = 'u8[131072]{0}', space=vmem, size = 0x20000, scoped, tag = 'output window, operand 0']
    %7 = vsyncpa [#allocation3], 0
    %s8 = scalar_lea.sflag [#allocation3], 1
    %9 = vsyncpa %s8, 0
    %10 = vsyncpa [#allocation4], 0
    %s11 = scalar_lea.sflag [#allocation4], 1
    %12 = vsyncpa %s11, 0
    loop: start=0, step=1, limit=4
    $region2: #{tpu_custom_call.1} parent=1 // loop_pre_header
      _
    $region3: #{tpu_custom_call.1} parent=1 // loop_header
      %s14 = sphi 0, %s18
      %p15 = scmp.ge.s32.totalorder %s14, 4
      %s21 = sphi 0, %s33
      %s22 = sphi 0, %s29
      %s23 = sphi 0, %s21
      %s24 = sphi 0, %s22
      %s25 = sphi 0, %s23
      %s26 = sphi 0, %s24
      %s38 = sphi 0, %s40
      %s41 = sphi 0, %s38
      %s42 = sphi 0, %s41
      %s58 = sphi 0, %s42
      %s64 = sphi 0, %s66
      %s67 = sphi 0, %s64
      %s68 = sphi 0, %s67
      %s84 = sphi 0, %s68
      %s92 = sphi 0, %s94
      %s95 = sphi 0, %s92
      %s96 = sphi 0, %s95
      %s112 = sphi 0, %s96
    $region4: #{tpu_custom_call.1} parent=1 // loop_header_branch
      %17 = sbr.rel (%p15) target = $region8
    $region5: #{tpu_custom_call.1} parent=1 // loop_body
      %s19 = ssub.s32 %s14, 1
      %s20 = ssub.s32 %s14, 2
      %s27 = sadd.s32 1, %s22
      %p28 = scmp.ge.s32.totalorder %s27, 2
      %s29 = scalar_select %p28, 0, %s27
      %s30 = sadd.s32 1, %s21
      %s31 = scalar_select %p28, %s30, %s21
      %p32 = scmp.ge.s32.totalorder %s31, 1
      %s33 = scalar_select %p32, 0, %s31
      %s34 = ssub.s32 %s21, %s33
      %s35 = ssub.s32 %s22, %s29
      %s36 = sor.u32 %s34, %s35
      %p37 = scmp.eq.s32.totalorder %s36, 0
      %s39 = sadd.s32 %s38, 1
      %s40 = scalar_select %p37, %s38, %s39
      %p43 = pneg %p37
      %p44 = scmp.eq.s32.totalorder %s14, 1
      %p45 = por %p43, %p44
      %p46 = scmp.ne.s32.totalorder %s38, %s41
      %p47 = scmp.eq.s32.totalorder %s14, 0
      %p48 = por %p46, %p47
      %p49 = scmp.ne.s32.totalorder %s38, %s41
      %p50 = scmp.eq.s32.totalorder %s19, 1
      %p51 = por %p49, %p50
      %p52 = scmp.ne.s32.totalorder %s41, %s42
      %p53 = scmp.eq.s32.totalorder %s19, 0
      %p54 = por %p52, %p53
      %p55 = scmp.ne.s32.totalorder %s41, %s42
      %p56 = scmp.eq.s32.totalorder %s20, 1
      %p57 = por %p55, %p56
      %p59 = scmp.ne.s32.totalorder %s42, %s58
      %p60 = scmp.eq.s32.totalorder %s20, 0
      %p61 = por %p59, %p60
      %s62 = ssub.s32 %s21, %s33
      %p63 = scmp.eq.s32.totalorder %s62, 0
      %s65 = sadd.s32 %s64, 1
      %s66 = scalar_select %p63, %s64, %s65
      %p69 = pneg %p63
      %p70 = scmp.eq.s32.totalorder %s14, 1
      %p71 = por %p69, %p70
      %p72 = scmp.ne.s32.totalorder %s64, %s67
      %p73 = scmp.eq.s32.totalorder %s14, 0
      %p74 = por %p72, %p73
      %p75 = scmp.ne.s32.totalorder %s64, %s67
      %p76 = scmp.eq.s32.totalorder %s19, 1
      %p77 = por %p75, %p76
      %p78 = scmp.ne.s32.totalorder %s67, %s68
      %p79 = scmp.eq.s32.totalorder %s19, 0
      %p80 = por %p78, %p79
      %p81 = scmp.ne.s32.totalorder %s67, %s68
      %p82 = scmp.eq.s32.totalorder %s20, 1
      %p83 = por %p81, %p82
      %p85 = scmp.ne.s32.totalorder %s68, %s84
      %p86 = scmp.eq.s32.totalorder %s20, 0
      %p87 = por %p85, %p86
      %s88 = ssub.s32 %s21, %s33
      %s89 = ssub.s32 %s22, %s29
      %s90 = sor.u32 %s88, %s89
      %p91 = scmp.eq.s32.totalorder %s90, 0
      %s93 = sadd.s32 %s92, 1
      %s94 = scalar_select %p91, %s92, %s93
      %p97 = pneg %p91
      %p98 = scmp.eq.s32.totalorder %s14, 1
      %p99 = por %p97, %p98
      %p100 = scmp.ne.s32.totalorder %s92, %s95
      %p101 = scmp.eq.s32.totalorder %s14, 0
      %p102 = por %p100, %p101
      %p103 = scmp.ne.s32.totalorder %s92, %s95
      %p104 = scmp.eq.s32.totalorder %s19, 1
      %p105 = por %p103, %p104
      %p106 = scmp.ne.s32.totalorder %s95, %s96
      %p107 = scmp.eq.s32.totalorder %s19, 0
      %p108 = por %p106, %p107
      %p109 = scmp.ne.s32.totalorder %s95, %s96
      %p110 = scmp.eq.s32.totalorder %s20, 1
      %p111 = por %p109, %p110
      %p113 = scmp.ne.s32.totalorder %s96, %s112
      %p114 = scmp.eq.s32.totalorder %s20, 0
      %p115 = por %p113, %p114
      %p116 = scmp.le.s32.totalorder 1, %s14
      %p117 = scmp.lt.s32.totalorder %s14, 3
      %p118 = pnand %p116, %p117
      %p119 = pneg %p118
      // Predicated region
      $region9: #{tpu_custom_call.1} parent=5 // pred_check
        _
      $region10: #{tpu_custom_call.1} parent=5 // pred_check_branch
        %121 = sbr.rel (%p118) target = $region12
      $region11: #{tpu_custom_call.1} parent=5 // pred_region
        %s122 = ssub.s32 %s14, 1
        // Predicated region
        $region13: #{tpu_custom_call.1} parent=11 // pred_check
          %p123 = pneg %p80
        $region14: #{tpu_custom_call.1} parent=11 // pred_check_branch
          %125 = sbr.rel (%p123) target = $region16
        $region15: #{tpu_custom_call.1} parent=11 // pred_region
          %s126 = smul.u32 2, %s23
          %p127 = scmp.lt.s32.totalorder %s126, 1
          %s128 = scalar_select %p127, %s126, 1
          %s129 = smul.addr %s128, 8
          %s130 = scalar_lea.vmem %s1, %s129
          %s131 = smul.u32 2, %s23
        $region16: #{tpu_custom_call.1} parent=11 // pred_fallthru
          _
      $region12: #{tpu_custom_call.1} parent=5 // pred_fallthru
        _
      %p132 = scmp.lt.s32.totalorder %s14, 2
      // Predicated region
      $region17: #{tpu_custom_call.1} parent=5 // pred_check
        %p133 = pneg %p132
      $region18: #{tpu_custom_call.1} parent=5 // pred_check_branch
        %135 = sbr.rel (%p133) target = $region20
      $region19: #{tpu_custom_call.1} parent=5 // pred_region
        // Predicated region
        $region21: #{tpu_custom_call.1} parent=19 // pred_check
          %p136 = pneg %p48
        $region22: #{tpu_custom_call.1} parent=19 // pred_check_branch
          %138 = sbr.rel (%p136) target = $region24
        $region23: #{tpu_custom_call.1} parent=19 // pred_region
          %s139 = sand.u32 %s38, 1
          %s140 = scalar_lea.sflag [#allocation3], %s139
          %s141 = sand.u32 %s38, 1
          %s142 = smul.addr %s141, 64
          %s143 = scalar_lea.vmem [#allocation2], %s142
          %s144 = smul.u32 2, %s21
          %s145 = smul.u32 4, %s22
          %s147 = ssub.s32 1024, 1024
          %148 = vsyncadd %s140, %s147
          %s149 = smul.addr %s144, 8
          %s150 = sadd.s32 %s145, %s149
          %s151 = smul.addr %s150, 128
          %s152 = scalar_lea.hbm %s0, %s151
          %s153 = sshll.u32 %s143, 4
          %s154 = int_to_ptr.vmem [resolvable:$true] %s153
          %159 = dma.hbm_to_vmem [thread:$0]  %s152, 1024, %s154, %s140, 1024, 512, 32
        $region24: #{tpu_custom_call.1} parent=19 // pred_fallthru
          _
      $region20: #{tpu_custom_call.1} parent=5 // pred_fallthru
        _
      %p160 = scmp.le.s32.totalorder 1, %s14
      %p161 = scmp.lt.s32.totalorder %s14, 3
      %p162 = pnand %p160, %p161
      %p163 = pneg %p162
      // Predicated region
      $region25: #{tpu_custom_call.1} parent=5 // pred_check
        _
      $region26: #{tpu_custom_call.1} parent=5 // pred_check_branch
        %165 = sbr.rel (%p162) target = $region28
      $region27: #{tpu_custom_call.1} parent=5 // pred_region
        %s166 = ssub.s32 %s14, 1
        %s167 = sand.u32 %s41, 1
        %s168 = scalar_lea.sflag [#allocation3], %s167
        %s169 = sand.u32 %s41, 1
        %s170 = smul.addr %s169, 64
        %s171 = scalar_lea.vmem [#allocation2], %s170
        // Predicated region
        $region29: #{tpu_custom_call.1} parent=27 // pred_check
          %p172 = pneg %p54
        $region30: #{tpu_custom_call.1} parent=27 // pred_check_branch
          %174 = sbr.rel (%p172) target = $region32
        $region31: #{tpu_custom_call.1} parent=27 // pred_region
          %175 = dma.done %s168, 1024
        $region32: #{tpu_custom_call.1} parent=27 // pred_fallthru
          _
        %s176 = sand.u32 %s41, 1
        %s177 = scalar_lea.sflag [#allocation3], %s176
        %s178 = sand.u32 %s41, 1
        %s179 = smul.addr %s178, 64
        %s180 = scalar_lea.vmem [#allocation2], %s179
        %p181 = pneg %p54
        %p182 = pneg %p51
        %s183 = smul.u32 2, %s23
        %p184 = scmp.lt.s32.totalorder %s183, 1
        %s185 = scalar_select %p184, %s183, 1
        %s186 = smul.addr %s185, 8
        %s187 = scalar_lea.vmem %s1, %s186
        %p188 = pneg %p80
        %p189 = pneg %p77
        %p190 = pneg %p108
        %p191 = pneg %p105
        %s192 = sand.u32 %s95, 1
        %s193 = scalar_lea.sflag [#allocation4], %s192
        %s194 = sand.u32 %s95, 1
        %s195 = smul.addr %s194, 128
        %s196 = scalar_lea.vmem [#allocation5], %s195
        %s197 = smul.u32 2, %s23
        %s198 = smul.u32 4, %s24
        %s199 = smul.u32 2, %s23
        %p200 = scmp.lt.s32.totalorder %s199, 1
        %s201 = scalar_select %p200, %s199, 1
        %s202 = smul.addr %s201, 8
        %s203 = scalar_lea.vmem %s1, %s202
        %s204 = smul.u32 2, %s23
        %s205 = smul.u32 2, %s23
        %s206 = smul.u32 4, %s24
        %v207 = vld [vmem:[%s171] sm:$0xff]
        %v208 = vld [vmem:[%s171 + $0x8] sm:$0xff]
        %v209 = vld [vmem:[%s171 + $0x10] sm:$0xff]
        %v210 = vld [vmem:[%s171 + $0x18] sm:$0xff]
        %v211 = vld [vmem:[%s171 + $0x20] sm:$0xff]
        %v212 = vld [vmem:[%s171 + $0x28] sm:$0xff]
        %v213 = vld [vmem:[%s171 + $0x30] sm:$0xff]
        %v214 = vld [vmem:[%s171 + $0x38] sm:$0xff]
        %215 = vst [vmem:[%s196] sm:$0xff] %v207
        %216 = vst [vmem:[%s196 + $0x8] sm:$0xff] %v208
        %217 = vst [vmem:[%s196 + $0x10] sm:$0xff] %v209
        %218 = vst [vmem:[%s196 + $0x18] sm:$0xff] %v210
        %219 = vst [vmem:[%s196 + $0x40] sm:$0xff] %v211
        %220 = vst [vmem:[%s196 + $0x48] sm:$0xff] %v212
        %221 = vst [vmem:[%s196 + $0x50] sm:$0xff] %v213
        %222 = vst [vmem:[%s196 + $0x58] sm:$0xff] %v214
        %v223 = vld [vmem:[%s203] sm:$0xff]
        %v224 = vld [vmem:[%s203 + $0x8] sm:$0xff]
        %226 = vset.pattern.permute.xlu0 0
        %227 = vperm.xlu0 %226, %v223
        %v228 = vpop.permute.xlu0 %227
        %231 = vset.pattern.permute.xlu0 0
        %232 = vperm.xlu0 %231, %v224
        %v233 = vpop.permute.xlu0 %232
        %235 = vst [vmem:[%s196 + $0x20] sm:$0xff] %v228
        %236 = vst [vmem:[%s196 + $0x28] sm:$0xff] %v228
        %237 = vst [vmem:[%s196 + $0x30] sm:$0xff] %v228
        %238 = vst [vmem:[%s196 + $0x38] sm:$0xff] %v228
        %239 = vst [vmem:[%s196 + $0x60] sm:$0xff] %v233
        %240 = vst [vmem:[%s196 + $0x68] sm:$0xff] %v233
        %241 = vst [vmem:[%s196 + $0x70] sm:$0xff] %v233
        %242 = vst [vmem:[%s196 + $0x78] sm:$0xff] %v233
        %s243 = sand.u32 %s95, 1
        %s244 = scalar_lea.sflag [#allocation4], %s243
        %s245 = sand.u32 %s95, 1
        %s246 = smul.addr %s245, 128
        %s247 = scalar_lea.vmem [#allocation5], %s246
        // Predicated region
        $region33: #{tpu_custom_call.1} parent=27 // pred_check
          %p248 = pneg %p105
        $region34: #{tpu_custom_call.1} parent=27 // pred_check_branch
          %250 = sbr.rel (%p248) target = $region36
        $region35: #{tpu_custom_call.1} parent=27 // pred_region
          %s251 = smul.u32 2, %s23
          %s252 = smul.u32 4, %s24
          %s254 = ssub.s32 2048, 2048
          %255 = vsyncadd %s244, %s254
          %s256 = smul.addr %s251, 16
          %s257 = sadd.s32 %s252, %s256
          %s258 = smul.addr %s257, 128
          %s259 = scalar_lea.hbm %s2, %s258
          %s260 = sshll.u32 %s247, 4
          %s261 = int_to_ptr.vmem [resolvable:$true] %s260
          %266 = dma.vmem_to_hbm [thread:$0]  %s261, 2048, %s259, %s244, 512, 1024, 32
        $region36: #{tpu_custom_call.1} parent=27 // pred_fallthru
          _
      $region28: #{tpu_custom_call.1} parent=5 // pred_fallthru
        _
      %p267 = scmp.le.s32.totalorder 2, %s14
      // Predicated region
      $region37: #{tpu_custom_call.1} parent=5 // pred_check
        %p268 = pneg %p267
      $region38: #{tpu_custom_call.1} parent=5 // pred_check_branch
        %270 = sbr.rel (%p268) target = $region40
      $region39: #{tpu_custom_call.1} parent=5 // pred_region
        %s271 = ssub.s32 %s14, 2
        // Predicated region
        $region41: #{tpu_custom_call.1} parent=39 // pred_check
          %p272 = pneg %p111
        $region42: #{tpu_custom_call.1} parent=39 // pred_check_branch
          %274 = sbr.rel (%p272) target = $region44
        $region43: #{tpu_custom_call.1} parent=39 // pred_region
          %s275 = sand.u32 %s96, 1
          %s276 = scalar_lea.sflag [#allocation4], %s275
          %s277 = sand.u32 %s96, 1
          %s278 = smul.addr %s277, 128
          %s279 = scalar_lea.vmem [#allocation5], %s278
          %280 = dma.done %s276, 2048
        $region44: #{tpu_custom_call.1} parent=39 // pred_fallthru
          _
      $region40: #{tpu_custom_call.1} parent=5 // pred_fallthru
        _
    $region6: #{tpu_custom_call.1} parent=1 // loop_footer
      %s18 = sadd.s32 1, %s14
    $region7: #{tpu_custom_call.1} parent=1 // loop_footer_branch
      %13 = sbr.rel target = $region3
    $region8: #{tpu_custom_call.1} parent=1 // loop_exit
      _
    %281 = vsyncpa [#allocation3], 1
    %s282 = scalar_lea.sflag [#allocation3], 1
    %283 = vsyncpa %s282, 1
    %284 = vsyncpa [#allocation4], 1
    %s285 = scalar_lea.sflag [#allocation4], 1
    %286 = vsyncpa %s285, 1

</llo_original>
